<compile_context>
chip_gen: v5e
topology: v5e:2x2
jax: 0.10.0
libtpu: 0.0.40
codegen_flags: <defaults>
</compile_context>

<pallas_src>
import jax
import jax.numpy as jnp
from jax.experimental import pallas as pl
from jax.experimental.pallas import tpu as pltpu


def _copy_kernel(x_ref, o_ref):
    # Straight VMEM copy of one (TN, D) row-tile. HBM<->VMEM movement is
    # double-buffered by the Pallas pipeline.
    o_ref[...] = x_ref[...]


def _sublane_multiple(dtype) -> int:
    """Legal sublane multiple for block rows: 8 (f32), 16 (bf16), 32 (int8/fp8)."""
    itemsize = jnp.dtype(dtype).itemsize
    return max(8, 32 // max(1, itemsize))


def _vmem_budget_bytes() -> int:
    """Scoped-VMEM budget for this kernel: half of physical VMEM (generation-aware)."""
    cap = 0
    try:
        cap = int(pltpu.get_tpu_info().vmem_capacity_bytes)
    except Exception:
        cap = 0
    if cap <= 0:
        try:
            kind = jax.devices()[0].device_kind.lower()
        except Exception:  # pragma: no cover - conservative fallback
            kind = ""
        cap = (64 << 20) if ("v7" in kind or "7x" in kind) else (128 << 20)
    return max(8 << 20, cap // 2)


def _pick_tile_rows(n_rows: int, row_bytes: int, sub: int, budget: int) -> int:
    """Row-tile size targeting ~4 MiB tiles, clamped to the VMEM budget."""
    target = max(1, (4 << 20) // row_bytes)       # ~4 MiB/tile saturates HBM BW
    cap = max(1, budget // (4 * row_bytes))       # 4 double-buffered tiles fit
    tn = min(target, cap)
    tn = max(sub, (tn // sub) * sub)
    if n_rows <= tn:
        # Full-dim block is always a legal block shape (no sublane constraint).
        return n_rows
    return tn


def unflatten(x: jax.Array, C: int = 128, H: int = 7, W: int = 7,
              *, force_kernel: bool = False,
              tile_rows: int | None = None) -> jax.Array:
    """Equivalent of Unflatten.forward: (N, C*H*W) -> (N, C, H, W).

    Default path is a metadata-only reshape (no kernel, no HBM traffic).
    `force_kernel=True` routes through a Pallas streaming copy (explicit
    fusion boundary).
    """
    N, D = x.shape
    assert D == C * H * W, f"expected last dim {C * H * W}, got {D}"

    if not force_kernel:
        # Metadata-only, same semantics as torch .view on a contiguous tensor.
        return x.reshape(N, C, H, W)

    itemsize = jnp.dtype(x.dtype).itemsize
    row_bytes = D * itemsize
    sub = _sublane_multiple(x.dtype)
    budget = _vmem_budget_bytes()

    if tile_rows is None:
        tn = _pick_tile_rows(N, row_bytes, sub, budget)
    else:
        # Validate/round user override: sublane multiple unless == N, and must
        # fit the VMEM budget (4 double-buffered tiles).
        tn = max(1, int(tile_rows))
        if tn >= N:
            tn = N
        else:
            tn = max(sub, (tn // sub) * sub)
        max_rows = budget // (4 * row_bytes)
        if tn > max_rows:
            tn = min(max(sub, (max_rows // sub) * sub), N)

    # VMEM actually needed: double-buffered input + output tiles (+ slack),
    # capped strictly below physical VMEM on every generation.
    needed = 4 * tn * row_bytes
    vmem_limit = int(min(max(int(needed * 1.25) + (2 << 20), 16 << 20), budget))

    flat = pl.pallas_call(
        _copy_kernel,
        out_shape=jax.ShapeDtypeStruct((N, D), x.dtype),
        grid=(pl.cdiv(N, tn),),
        # Keep the full D as the lane-dense last dim; never tile it.
        in_specs=[pl.BlockSpec((tn, D), lambda i: (i, 0))],
        out_specs=pl.BlockSpec((tn, D), lambda i: (i, 0)),
        compiler_params=pltpu.CompilerParams(
            dimension_semantics=("parallel",),
            vmem_limit_bytes=vmem_limit,
        ),
        cost_estimate=pl.CostEstimate(
            flops=0,
            transcendentals=0,
            bytes_accessed=2 * N * D * itemsize,
        ),
    )(x)

    # Metadata-only reshape; no data is moved here.
    return flat.reshape(N, C, H, W)


def unflatten_ref(x: jax.Array, C: int = 128, H: int = 7, W: int = 7) -> jax.Array:
    """Pure-JAX reference (mirrors torch: x.view(N, C, H, W))."""
    return x.reshape(x.shape[0], C, H, W)


if __name__ == "__main__":
    # Module defaults: C=128, H=7, W=7 ; small batch N=2.
    N, C, H, W = 2, 128, 7, 7
    key = jax.random.PRNGKey(0)
    x = jax.random.normal(key, (N, C * H * W), dtype=jnp.float32)
    y_ref = unflatten_ref(x, C, H, W)

    # Production fast path: metadata-only reshape, no kernel emitted.
    y_fast = jax.block_until_ready(unflatten(x, C, H, W))
    assert y_fast.shape == (N, C, H, W), y_fast.shape
    assert bool(jnp.array_equal(y_fast, y_ref)), "fast path mismatch"

    # Explicit kernel path (fusion boundary), single full-dim block.
    y_k = jax.block_until_ready(unflatten(x, C, H, W, force_kernel=True))
    assert y_k.shape == (N, C, H, W) and y_k.dtype == x.dtype
    assert bool(jnp.array_equal(y_k, y_ref)), "kernel path mismatch"

    # Multi-block path with a partial last block: N=20 rows, 8-row tiles.
    N2 = 20
    x2 = jax.random.normal(jax.random.PRNGKey(1), (N2, C * H * W),
                           dtype=jnp.float32)
    y2 = jax.block_until_ready(
        unflatten(x2, C, H, W, force_kernel=True, tile_rows=8))
    assert bool(jnp.array_equal(y2, unflatten_ref(x2, C, H, W))), \
        "mismatch on tiled f32 path"

    # bf16 path: user tile_rows=8 gets rounded to the bf16 sublane multiple (16).
    x3 = x2.astype(jnp.bfloat16)
    y3 = jax.block_until_ready(
        unflatten(x3, C, H, W, force_kernel=True, tile_rows=8))
    assert bool(jnp.array_equal(y3, unflatten_ref(x3, C, H, W))), \
        "mismatch on tiled bf16 path"

    print("KERNEL_OK")
</pallas_src>

<mosaic_0001>
module attributes {stable_mosaic.version = 11 : i64} {
  func.func @_copy_kernel(%arg0: i32, %arg1: memref<2x6272xf32, #tpu.memory_space<vmem>>, %arg2: memref<2x6272xf32, #tpu.memory_space<vmem>>) attributes {dimension_semantics = [#tpu.dimension_semantics<parallel>], iteration_bounds = array<i64: 1>, scalar_prefetch = 0 : i64, scratch_operands = 0 : i64, tpu.core_type = #tpu.core_type<tc>, window_params = [{transform_indices = @transform_0, window_bounds = array<i64: 2, 6272>}, {transform_indices = @transform_1, window_bounds = array<i64: 2, 6272>}]} {
    %c0 = arith.constant 0 : index
    %c0_0 = arith.constant 0 : index
    %0 = vector.load %arg1[%c0, %c0_0] : memref<2x6272xf32, #tpu.memory_space<vmem>>, vector<2x6272xf32>
    %c0_1 = arith.constant 0 : index
    %c0_2 = arith.constant 0 : index
    %1 = vector.load %arg2[%c0_1, %c0_2] : memref<2x6272xf32, #tpu.memory_space<vmem>>, vector<2x6272xf32>
    tpu.vector_store %arg2[%c0_1, %c0_2], %0 {strides = array<i32>} : memref<2x6272xf32, #tpu.memory_space<vmem>>, vector<2x6272xf32>,
    return
  }
  func.func @transform_0(%arg0: i32) -> (i32, i32) {
    %c0_i32 = arith.constant 0 : i32
    %c0_i32_0 = arith.constant 0 : i32
    return %arg0, %c0_i32 : i32, i32
  }
  func.func @transform_1(%arg0: i32) -> (i32, i32) {
    %c0_i32 = arith.constant 0 : i32
    %c0_i32_0 = arith.constant 0 : i32
    return %arg0, %c0_i32 : i32, i32
  }
}

</mosaic_0001>

<llo_original>
// kernel: tpu_custom_call.1
$region0: #{tpu_custom_call.1}
  #allocation0 [shape = 'u32[]', space=smem, size = 0x4, offset = 0x4, fixed_abs, tag = 'smem constant byte address 0x4 - core index']
  #allocation1 [shape = 'u32[72,128]{1,0:T(1,128)}', space=vmem, size = 0x9000, scoped, tag = 'internal scratch']
  %s0 = inlined_call_operand.hbm [shape: f32[2,6272], index: 0, kind: input, shape index: {}]
  %s1 = inlined_call_operand.hbm [shape: f32[2,6272], index: 1, kind: output, shape index: {}]
  %s2 = sld [smem:[#allocation0]]
  $region18: #{tpu_custom_call.1} parent=0
    _
  %s4 = ssub.s32 1, %s2
  %s5 = scalar_select 0, %s4, %s2
  $region1: #{tpu_custom_call.1} parent=0
    #allocation2 [shape = 'u8[50176]{0}', space=vmem, size = 0xc400, scoped, tag = 'input window, operand 0, single buffered']
    #allocation3 [shape = 's32[1]{0}', space=sflag, size = 0x4, scoped, tag = 'scoped memory for tpu_custom_call.1']
    #allocation4 [shape = 's32[1]{0}', space=sflag, size = 0x4, scoped, tag = 'scoped memory for tpu_custom_call.1']
    #allocation5 [shape = 'u8[50176]{0}', space=vmem, size = 0xc400, scoped, tag = 'output window, operand 0, single buffered']
    %6 = vsyncpa [#allocation3], 0
    %7 = vsyncpa [#allocation4], 0
    // Predicated region
    $region2: #{tpu_custom_call.1} parent=1 // pred_check
      _
    $region3: #{tpu_custom_call.1} parent=1 // pred_check_branch
      %9 = sbr.rel (0) target = $region5
    $region4: #{tpu_custom_call.1} parent=1 // pred_region
      %11 = vsyncadd [#allocation3], 0
      %s13 = sshll.u32 %s0, 4
      %s14 = int_to_ptr.hbm [resolvable:$true] %s13
      %s15 = sshll.u32 [#allocation2], 4
      %s16 = int_to_ptr.vmem [resolvable:$true] %s15
      %18 = dma.hbm_to_vmem [thread:$0]  %s14, 1568, %s16, [#allocation3]
    $region5: #{tpu_custom_call.1} parent=1 // pred_fallthru
      _
    // Predicated region
    $region6: #{tpu_custom_call.1} parent=1 // pred_check
      _
    $region7: #{tpu_custom_call.1} parent=1 // pred_check_branch
      %20 = sbr.rel (0) target = $region9
    $region8: #{tpu_custom_call.1} parent=1 // pred_region
      %22 = dma.done [#allocation3], 1568
    $region9: #{tpu_custom_call.1} parent=1 // pred_fallthru
      _
    %v23 = vld [vmem:[#allocation2] sm:$0xff]
    %v24 = vld [vmem:[#allocation2 + $0x8] sm:$0xff]
    %v25 = vld [vmem:[#allocation2 + $0x10] sm:$0xff]
    %v26 = vld [vmem:[#allocation2 + $0x18] sm:$0xff]
    %v27 = vld [vmem:[#allocation2 + $0x20] sm:$0xff]
    %v28 = vld [vmem:[#allocation2 + $0x28] sm:$0xff]
    %v29 = vld [vmem:[#allocation2 + $0x30] sm:$0xff]
    %v30 = vld [vmem:[#allocation2 + $0x38] sm:$0xff]
    %v31 = vld [vmem:[#allocation2 + $0x40] sm:$0xff]
    %v32 = vld [vmem:[#allocation2 + $0x48] sm:$0xff]
    %v33 = vld [vmem:[#allocation2 + $0x50] sm:$0xff]
    %v34 = vld [vmem:[#allocation2 + $0x58] sm:$0xff]
    %v35 = vld [vmem:[#allocation2 + $0x60] sm:$0x3]
    %36 = vst [vmem:[#allocation5] sm:$0xff] %v23
    %37 = vst [vmem:[#allocation5 + $0x8] sm:$0xff] %v24
    %38 = vst [vmem:[#allocation5 + $0x10] sm:$0xff] %v25
    %39 = vst [vmem:[#allocation5 + $0x18] sm:$0xff] %v26
    %40 = vst [vmem:[#allocation5 + $0x20] sm:$0xff] %v27
    %41 = vst [vmem:[#allocation5 + $0x28] sm:$0xff] %v28
    %42 = vst [vmem:[#allocation5 + $0x30] sm:$0xff] %v29
    %43 = vst [vmem:[#allocation5 + $0x38] sm:$0xff] %v30
    %44 = vst [vmem:[#allocation5 + $0x40] sm:$0xff] %v31
    %45 = vst [vmem:[#allocation5 + $0x48] sm:$0xff] %v32
    %46 = vst [vmem:[#allocation5 + $0x50] sm:$0xff] %v33
    %47 = vst [vmem:[#allocation5 + $0x58] sm:$0xff] %v34
    %48 = vst [vmem:[#allocation5 + $0x60] sm:$0x3] %v35
    // Predicated region
    $region10: #{tpu_custom_call.1} parent=1 // pred_check
      _
    $region11: #{tpu_custom_call.1} parent=1 // pred_check_branch
      %50 = sbr.rel (0) target = $region13
    $region12: #{tpu_custom_call.1} parent=1 // pred_region
      %52 = vsyncadd [#allocation4], 0
      %s54 = sshll.u32 [#allocation5], 4
      %s55 = int_to_ptr.vmem [resolvable:$true] %s54
      %s56 = sshll.u32 %s1, 4
      %s57 = int_to_ptr.hbm [resolvable:$true] %s56
      %59 = dma.vmem_to_hbm [thread:$0]  %s55, 1568, %s57, [#allocation4]
    $region13: #{tpu_custom_call.1} parent=1 // pred_fallthru
      _
    // Predicated region
    $region14: #{tpu_custom_call.1} parent=1 // pred_check
      _
    $region15: #{tpu_custom_call.1} parent=1 // pred_check_branch
      %61 = sbr.rel (0) target = $region17
    $region16: #{tpu_custom_call.1} parent=1 // pred_region
      %63 = dma.done [#allocation4], 1568
    $region17: #{tpu_custom_call.1} parent=1 // pred_fallthru
      _
    %64 = vsyncpa [#allocation3], 1
    %65 = vsyncpa [#allocation4], 1

</llo_original>
